<compile_context>
chip_gen: v7x
topology: tpu7x:2x2x1
jax: 0.10.0
libtpu: 0.0.40
codegen_flags: <defaults>
</compile_context>

<pallas_src>
import functools
import math

import jax
import jax.numpy as jnp
from jax.experimental import pallas as pl
from jax.experimental.pallas import tpu as pltpu


def _sinusoidal_kernel(t_ref, bands_ref, mask_ref, out_ref, *, groups: int):
    """One batch-row tile.

    t_ref:     (TB, g)   f32  -- g timesteps folded per output row
    bands_ref: (g,  LW)  f32  -- bands[r, c] = freqs[(c % dim) % half_dim] if c // dim == r else 0
    mask_ref:  (1,  LW)  f32  -- 1.0 on cos columns, 0.0 on sin columns
    out_ref:   (TB, LW)
    """
    # Lane expansion without relayout: emb[i, c] = t[i, c // dim] * freqs[(c % dim) % half_dim].
    # Each term is an exact f32 multiply; the masked-off terms are exact zeros.
    emb = t_ref[:, 0:1] * bands_ref[0:1, :]
    for r in range(1, groups):
        emb = emb + t_ref[:, r:r + 1] * bands_ref[r:r + 1, :]

    # Single full-width, lane-dense store; per-column select keeps exact sin/cos (no phase trick).
    out = jnp.where(mask_ref[...] > 0.5, jnp.cos(emb), jnp.sin(emb))
    out_ref[...] = out.astype(out_ref.dtype)


def _pick_row_tile(rows: int, lane_width: int) -> int:
    """Row tile for the (rows, lane_width) output grid."""
    if rows <= 8:
        return rows
    # At least 2 grid steps so v7x's two TensorCores both get work ("parallel" axis).
    tb = pl.cdiv(rows, 2)
    # Keep each (double-buffered) output tile <= ~4 MiB so default scoped VMEM is enough
    # on all generations (v5e 16 MiB, v6e 32 MiB, v7x 32 MiB scoped / 64 MiB physical).
    vmem_cap = max(8, (4 * 1024 * 1024) // (4 * lane_width))
    tb = min(tb, 512, vmem_cap)
    tb = max(8, (tb // 8) * 8)          # (8, 128) sublane alignment for non-full blocks
    return min(tb, rows)


@functools.partial(jax.jit, static_argnums=(1, 2))
def sinusoidal_position_embedding(time: jax.Array, dim: int,
                                  out_dtype=jnp.float32) -> jax.Array:
    """Pallas equivalent of SinusoidalPositionEmbedding(dim)(time).

    time: (B,) float array.  Returns (B, dim) in `out_dtype` (default f32, matching torch).
    """
    assert dim % 2 == 0, "dim must be even (torch concat of sin/cos halves)"
    assert dim >= 4, "dim must be >= 4 (dim == 2 divides by zero in the log-scale)"
    half_dim = dim // 2
    b = time.shape[0]
    neg_scale = -math.log(10000.0) / (half_dim - 1)

    # Fold g batch rows into the lane axis so the store is 128-lane dense for small dims.
    g = (128 // dim) if (dim < 128 and 128 % dim == 0) else 1
    lw = g * dim
    rows = pl.cdiv(b, g)
    b_pad = rows * g

    t = time.astype(jnp.float32)
    if b_pad != b:
        t = jnp.pad(t, (0, b_pad - b))          # padded rows are sliced off below
    t2 = t.reshape(rows, g)

    # Trace-time constant tables, resident across the whole grid (index_map -> (0, 0)).
    col = jnp.arange(lw, dtype=jnp.int32)
    d = col % dim
    freq = jnp.exp((d % half_dim).astype(jnp.float32) * neg_scale)          # (LW,)
    grp = col // dim
    bands = jnp.where(grp[None, :] == jnp.arange(g, dtype=jnp.int32)[:, None],
                      freq[None, :], 0.0).astype(jnp.float32)               # (g, LW)
    cos_mask = (d >= half_dim).astype(jnp.float32)[None, :]                 # (1, LW)

    tb = _pick_row_tile(rows, lw)
    grid = (pl.cdiv(rows, tb),)

    kernel = functools.partial(_sinusoidal_kernel, groups=g)

    out = pl.pallas_call(
        kernel,
        out_shape=jax.ShapeDtypeStruct((rows, lw), out_dtype),
        grid=grid,
        in_specs=[
            pl.BlockSpec((tb, g), lambda i: (i, 0)),     # time tile
            pl.BlockSpec((g, lw), lambda i: (0, 0)),     # freq bands (resident)
            pl.BlockSpec((1, lw), lambda i: (0, 0)),     # cos mask   (resident)
        ],
        out_specs=pl.BlockSpec((tb, lw), lambda i: (i, 0)),
        compiler_params=pltpu.CompilerParams(dimension_semantics=("parallel",)),
    )(t2, bands, cos_mask)

    # Free row-major reinterpretation back to (B, dim).
    return out.reshape(b_pad, dim)[:b]


def _reference(time: jax.Array, dim: int) -> jax.Array:
    half_dim = dim // 2
    scale = math.log(10000.0) / (half_dim - 1)
    freqs = jnp.exp(jnp.arange(half_dim, dtype=jnp.float32) * -scale)
    emb = time.astype(jnp.float32)[:, None] * freqs[None, :]
    return jnp.concatenate([jnp.sin(emb), jnp.cos(emb)], axis=-1)


if __name__ == "__main__":
    key = jax.random.PRNGKey(0)
    B, DIM = 8, 32
    # "time" values, like diffusion timesteps
    time = jax.random.uniform(key, (B,), dtype=jnp.float32, minval=0.0, maxval=1000.0)

    out = sinusoidal_position_embedding(time, DIM)
    out = jax.block_until_ready(out)

    ref = _reference(time, DIM)
    assert out.shape == (B, DIM)
    assert jnp.allclose(out, ref, atol=1e-5, rtol=1e-5), "mismatch vs reference"

    print("KERNEL_OK")
</pallas_src>

<mosaic_0001>
module attributes {stable_mosaic.version = 11 : i64} {
  func.func @_sinusoidal_kernel(%arg0: i32, %arg1: memref<2x4xf32, #tpu.memory_space<vmem>>, %arg2: memref<4x128xf32, #tpu.memory_space<vmem>>, %arg3: memref<1x128xf32, #tpu.memory_space<vmem>>, %arg4: memref<2x128xf32, #tpu.memory_space<vmem>>) attributes {dimension_semantics = [#tpu.dimension_semantics<parallel>], iteration_bounds = array<i64: 1>, scalar_prefetch = 0 : i64, scratch_operands = 0 : i64, tpu.core_type = #tpu.core_type<tc>, window_params = [{transform_indices = @transform_0, window_bounds = array<i64: 2, 4>}, {pipeline_mode = #tpu.pipeline_mode<synchronous>, transform_indices = @transform_1, window_bounds = array<i64: 4, 128>}, {pipeline_mode = #tpu.pipeline_mode<synchronous>, transform_indices = @transform_2, window_bounds = array<i64: 1, 128>}, {transform_indices = @transform_3, window_bounds = array<i64: 2, 128>}]} {
    %c0 = arith.constant 0 : index
    %c0_0 = arith.constant 0 : index
    %0 = vector.load %arg1[%c0, %c0_0] : memref<2x4xf32, #tpu.memory_space<vmem>>, vector<2x1xf32>
    %c0_1 = arith.constant 0 : index
    %c0_2 = arith.constant 0 : index
    %1 = vector.load %arg2[%c0_1, %c0_2] : memref<4x128xf32, #tpu.memory_space<vmem>>, vector<1x128xf32>
    %2 = vector.broadcast %0 : vector<2x1xf32> to vector<2x128xf32>
    %3 = vector.broadcast %1 : vector<1x128xf32> to vector<2x128xf32>
    %4 = arith.mulf %2, %3 : vector<2x128xf32>
    %c0_3 = arith.constant 0 : index
    %c1 = arith.constant 1 : index
    %5 = vector.load %arg1[%c0_3, %c1] : memref<2x4xf32, #tpu.memory_space<vmem>>, vector<2x1xf32>
    %c1_4 = arith.constant 1 : index
    %c0_5 = arith.constant 0 : index
    %6 = vector.load %arg2[%c1_4, %c0_5] : memref<4x128xf32, #tpu.memory_space<vmem>>, vector<1x128xf32>
    %7 = vector.broadcast %5 : vector<2x1xf32> to vector<2x128xf32>
    %8 = vector.broadcast %6 : vector<1x128xf32> to vector<2x128xf32>
    %9 = arith.mulf %7, %8 : vector<2x128xf32>
    %10 = arith.addf %4, %9 : vector<2x128xf32>
    %c0_6 = arith.constant 0 : index
    %c2 = arith.constant 2 : index
    %11 = vector.load %arg1[%c0_6, %c2] : memref<2x4xf32, #tpu.memory_space<vmem>>, vector<2x1xf32>
    %c2_7 = arith.constant 2 : index
    %c0_8 = arith.constant 0 : index
    %12 = vector.load %arg2[%c2_7, %c0_8] : memref<4x128xf32, #tpu.memory_space<vmem>>, vector<1x128xf32>
    %13 = vector.broadcast %11 : vector<2x1xf32> to vector<2x128xf32>
    %14 = vector.broadcast %12 : vector<1x128xf32> to vector<2x128xf32>
    %15 = arith.mulf %13, %14 : vector<2x128xf32>
    %16 = arith.addf %10, %15 : vector<2x128xf32>
    %c0_9 = arith.constant 0 : index
    %c3 = arith.constant 3 : index
    %17 = vector.load %arg1[%c0_9, %c3] : memref<2x4xf32, #tpu.memory_space<vmem>>, vector<2x1xf32>
    %c3_10 = arith.constant 3 : index
    %c0_11 = arith.constant 0 : index
    %18 = vector.load %arg2[%c3_10, %c0_11] : memref<4x128xf32, #tpu.memory_space<vmem>>, vector<1x128xf32>
    %19 = vector.broadcast %17 : vector<2x1xf32> to vector<2x128xf32>
    %20 = vector.broadcast %18 : vector<1x128xf32> to vector<2x128xf32>
    %21 = arith.mulf %19, %20 : vector<2x128xf32>
    %22 = arith.addf %16, %21 : vector<2x128xf32>
    %c0_12 = arith.constant 0 : index
    %c0_13 = arith.constant 0 : index
    %23 = vector.load %arg3[%c0_12, %c0_13] : memref<1x128xf32, #tpu.memory_space<vmem>>, vector<1x128xf32>
    %cst = arith.constant 5.000000e-01 : f32
    %24 = vector.broadcast %cst : f32 to vector<1x128xf32>
    %25 = arith.cmpf ogt, %23, %24 : vector<1x128xf32>
    %26 = math.cos %22 : vector<2x128xf32>
    %27 = math.sin %22 : vector<2x128xf32>
    %28 = vector.shape_cast %25 : vector<1x128xi1> to vector<1x128xi1>
    %29 = vector.broadcast %28 : vector<1x128xi1> to vector<2x128xi1>
    %30 = arith.select %29, %26, %27 : vector<2x128xi1>, vector<2x128xf32>
    %c0_14 = arith.constant 0 : index
    %c0_15 = arith.constant 0 : index
    %31 = vector.load %arg4[%c0_14, %c0_15] : memref<2x128xf32, #tpu.memory_space<vmem>>, vector<2x128xf32>
    tpu.vector_store %arg4[%c0_14, %c0_15], %30 {strides = array<i32>} : memref<2x128xf32, #tpu.memory_space<vmem>>, vector<2x128xf32>,
    return
  }
  func.func @transform_0(%arg0: i32) -> (i32, i32) {
    %c0_i32 = arith.constant 0 : i32
    %c0_i32_0 = arith.constant 0 : i32
    return %arg0, %c0_i32 : i32, i32
  }
  func.func @transform_1(%arg0: i32) -> (i32, i32) {
    %c0_i32 = arith.constant 0 : i32
    %c0_i32_0 = arith.constant 0 : i32
    %c0_i32_1 = arith.constant 0 : i32
    return %c0_i32, %c0_i32_0 : i32, i32
  }
  func.func @transform_2(%arg0: i32) -> (i32, i32) {
    %c0_i32 = arith.constant 0 : i32
    %c0_i32_0 = arith.constant 0 : i32
    %c0_i32_1 = arith.constant 0 : i32
    return %c0_i32, %c0_i32_0 : i32, i32
  }
  func.func @transform_3(%arg0: i32) -> (i32, i32) {
    %c0_i32 = arith.constant 0 : i32
    %c0_i32_0 = arith.constant 0 : i32
    return %arg0, %c0_i32 : i32, i32
  }
}

</mosaic_0001>

<llo_original>
// kernel: sinusoidal_position_embedding.1
$region0: #{sinusoidal_position_embedding.1}
  #allocation0 [shape = 'u32[]', space=smem, size = 0x4, offset = 0x4, fixed_abs, tag = 'smem constant byte address 0x4 - core index']
  #allocation1 [shape = 'u32[144,128]{1,0:T(1,128)}', space=vmem, size = 0x12000, scoped, tag = 'internal scratch']
  %s0 = inlined_call_operand.vmem [shape: f32[2,4], index: 0, kind: input, shape index: {}]
  %s1 = inlined_call_operand.vmem [shape: f32[4,128], index: 1, kind: input, shape index: {}]
  %s2 = inlined_call_operand.vmem [shape: f32[1,128], index: 2, kind: input, shape index: {}]
  %s3 = inlined_call_operand.vmem [shape: f32[2,128], index: 3, kind: output, shape index: {}]
  %s4 = sld [smem:[#allocation0]]
  $region22: #{sinusoidal_position_embedding.1} parent=0
    _
  %s6 = ssub.s32 1, %s4
  %s7 = scalar_select 0, %s6, %s4
  // Predicated region
  $region2: #{sinusoidal_position_embedding.1} parent=0 // pred_check
    _
  $region3: #{sinusoidal_position_embedding.1} parent=0 // pred_check_branch
    %9 = sbr.rel (0) target = $region5
  $region4: #{sinusoidal_position_embedding.1} parent=0 // pred_region
    _
  $region5: #{sinusoidal_position_embedding.1} parent=0 // pred_fallthru
    _
  // Predicated region
  $region6: #{sinusoidal_position_embedding.1} parent=0 // pred_check
    _
  $region7: #{sinusoidal_position_embedding.1} parent=0 // pred_check_branch
    %11 = sbr.rel (0) target = $region9
  $region8: #{sinusoidal_position_embedding.1} parent=0 // pred_region
    _
  $region9: #{sinusoidal_position_embedding.1} parent=0 // pred_fallthru
    _
  // Predicated region
  $region10: #{sinusoidal_position_embedding.1} parent=0 // pred_check
    _
  $region11: #{sinusoidal_position_embedding.1} parent=0 // pred_check_branch
    %13 = sbr.rel (0) target = $region13
  $region12: #{sinusoidal_position_embedding.1} parent=0 // pred_region
    _
  $region13: #{sinusoidal_position_embedding.1} parent=0 // pred_fallthru
    _
  %v14 = vld [vmem:[%s0] sm:$0x3]
  %v15 = vld [vmem:[%s1] sm:$0x1]
  %17 = vset.pattern.permute.xlu0 0
  %18 = vperm.xlu0 %17, %v14
  %v19 = vpop.permute.xlu0 %18
  %v21 = vlaneseq
  %v22 = vshrl.u32 %v21, 7
  %v23 = vsub.s32 0, %v22
  %v24 = vrot.slane %v15, %v23
  %v25 = vmul.f32 %v19, %v24
  %v26 = vld [vmem:[%s1 + $0x1] sm:$0x1]
  %27 = vset.pattern.permute.xlu0 1
  %28 = vperm.xlu0 %27, %v14
  %v29 = vpop.permute.xlu0 %28
  %v31 = vlaneseq
  %v32 = vshrl.u32 %v31, 7
  %v33 = vsub.s32 0, %v32
  %v34 = vrot.slane %v26, %v33
  %v35 = vmul.f32 %v29, %v34
  %v36 = vadd.f32 %v25, %v35
  %v37 = vld [vmem:[%s1 + $0x2] sm:$0x1]
  %38 = vset.pattern.permute.xlu0 2
  %39 = vperm.xlu0 %38, %v14
  %v40 = vpop.permute.xlu0 %39
  %v42 = vlaneseq
  %v43 = vshrl.u32 %v42, 7
  %v44 = vsub.s32 0, %v43
  %v45 = vrot.slane %v37, %v44
  %v46 = vmul.f32 %v40, %v45
  %v47 = vadd.f32 %v36, %v46
  %v48 = vld [vmem:[%s1 + $0x3] sm:$0x1]
  %49 = vset.pattern.permute.xlu0 3
  %50 = vperm.xlu0 %49, %v14
  %v51 = vpop.permute.xlu0 %50
  %v53 = vlaneseq
  %v54 = vshrl.u32 %v53, 7
  %v55 = vsub.s32 0, %v54
  %v56 = vrot.slane %v48, %v55
  %v57 = vmul.f32 %v51, %v56
  %v58 = vadd.f32 %v47, %v57
  %v59 = vld [vmem:[%s2] sm:$0x1]
  %vm60 = vcmp.gt.f32.partialorder %v59, 0.5
  %v61 = vand.u32 2147483647, %v58
  %vm62 = vcmp.le.f32.partialorder %v61, 0.7853982
  %vm63 = vcmp.lt.s32.totalorder %v58, 0
  %v64 = vand.u32 %v58, 2139095040
  %v65 = vshrl.u32 %v64, 23
  %v66 = vsub.s32 %v65, 127
  %v67 = vand.u32 2147483647, %v58
  %v68 = vand.u32 %v67, 8388607
  %v69 = vor.u32 %v68, 8388608
  %v70 = vsub.s32 0, %v69
  %v71 = vadd.s32 %v66, 1
  %vm72 = vcmp.gt.s32.totalorder %v71, 0
  %v73 = vsel %vm72, %v71, 0
  %v74 = vshrl.u32 %v73, 5
  %v75 = vand.u32 %v73, 31
  %v76 = vsub.s32 32, %v75
  %v77 = vshrl.u32 683565275, %v76
  %v78 = vshll.u32 683565275, %v75
  %v79 = vshrl.u32 2475754826, %v76
  %v80 = vor.u32 %v78, %v79
  %v81 = vshll.u32 2475754826, %v75
  %v82 = vshrl.u32 2131351028, %v76
  %v83 = vor.u32 %v81, %v82
  %v84 = vshll.u32 2131351028, %v75
  %v85 = vshrl.u32 2102212464, %v76
  %v86 = vor.u32 %v84, %v85
  %v87 = vshll.u32 2102212464, %v75
  %v88 = vshrl.u32 920167782, %v76
  %v89 = vor.u32 %v87, %v88
  %v90 = vshll.u32 920167782, %v75
  %v91 = vshrl.u32 1326507024, %v76
  %v92 = vor.u32 %v90, %v91
  %vm93 = vcmp.lt.s32.totalorder %v74, 1
  %vm94 = vcmp.lt.s32.totalorder %v74, 2
  %vm95 = vcmp.lt.s32.totalorder %v74, 3
  %vm96 = vcmp.lt.s32.totalorder %v74, 4
  %v97 = vsel %vm93, %v77, %v80
  %v98 = vsel %vm96, %v86, 2102212464
  %v99 = vsel %vm95, %v83, %v98
  %v100 = vsel %vm94, %v97, %v99
  %v101 = vsel %vm93, %v80, %v83
  %v102 = vsel %vm96, %v89, 920167782
  %v103 = vsel %vm95, %v86, %v102
  %v104 = vsel %vm94, %v101, %v103
  %v105 = vsel %vm93, %v83, %v86
  %v106 = vsel %vm96, %v92, 1326507024
  %v107 = vsel %vm95, %v89, %v106
  %v108 = vsel %vm94, %v105, %v107
  %v109 = vshll.u32 %v69, 8
  %v110 = vmul.u32.u64.compose %v109, %v108
  %v111 = vextract.low.u32 %v110
  %v112 = vextract.high.u32 %v110
  %v113 = vmul.u32.u64.compose %v109, %v104
  %v114 = vextract.low.u32 %v113
  %v115 = vextract.high.u32 %v113
  %v116 = vmul.u32 %v109, %v100
  %v117 = vadd.s32 %v112, %v114
  %vm118 = vc.u32 %v112, %v114
  %v119 = vadd.s32 %v115, 1
  %v120 = vsel %vm118, %v119, %v115
  %v121 = vadd.s32 %v116, %v120
  %v122 = vadd.s32 %v121, 536870912
  %v123 = vshrl.u32 %v122, 30
  %v124 = vshll.u32 %v123, 30
  %v125 = vsub.s32 %v121, %v124
  %vm126 = vcmp.lt.s32.totalorder %v125, 0
  %v127 = vsub.s32 0, %v125
  %v128 = vsel %vm126, %v127, %v125
  %v129 = vclz %v128
  %v130 = vsub.s32 %v129, 2
  %vm131 = vcmp.gt.s32.totalorder 0, %v130
  %v132 = vsel %vm131, 0, %v130
  %v133 = vsub.s32 32, %v132
  %v134 = vshll.u32 %v125, %v132
  %v135 = vshrl.u32 %v117, %v133
  %v136 = vor.u32 %v134, %v135
  %v137 = vsub.s32 4294967266, %v132
  %v138 = vadd.s32 %v137, 127
  %v139 = vshll.u32 %v138, 23
  %v140 = vor.u32 4788187, %v139
  %v141 = vand.u32 2147483647, %v140
  %v143 = vcvt.s32.f32 %v136
  %v144 = vmul.f32 %v143, %v141
  %v145 = vxor.u32 %v144, 2147483648
  %v146 = vsel %vm63, %v145, %v144
  %v147 = vsub.s32 4, %v123
  %v148 = vsel %vm63, %v147, %v123
  %v149 = vsel %vm62, %v58, %v146
  %v150 = vsel %vm62, 0, %v148
  %v151 = vcosq.f32.pop %v149
  %v152 = vsinq.f32.pop %v149
  %vm153 = vweird.f32 %v58
  %v154 = vand.u32 %v150, 3
  %vm155 = vcmp.lt.s32.totalorder %v154, 2
  %vm156 = vcmp.eq.s32.totalorder %v154, 0
  %v157 = vxor.u32 %v152, 2147483648
  %v158 = vsel %vm156, %v151, %v157
  %vm159 = vcmp.eq.s32.totalorder %v154, 2
  %v160 = vxor.u32 %v151, 2147483648
  %v161 = vsel %vm159, %v160, %v152
  %v162 = vsel %vm155, %v158, %v161
  %v163 = vsel %vm153, nan, %v162
  %v164 = vand.u32 2147483647, %v58
  %vm165 = vcmp.le.f32.partialorder %v164, 0.7853982
  %vm166 = vcmp.lt.s32.totalorder %v58, 0
  %v167 = vand.u32 %v58, 2139095040
  %v168 = vshrl.u32 %v167, 23
  %v169 = vsub.s32 %v168, 127
  %v170 = vand.u32 2147483647, %v58
  %v171 = vand.u32 %v170, 8388607
  %v172 = vor.u32 %v171, 8388608
  %v173 = vsub.s32 0, %v172
  %v174 = vadd.s32 %v169, 1
  %vm175 = vcmp.gt.s32.totalorder %v174, 0
  %v176 = vsel %vm175, %v174, 0
  %v177 = vshrl.u32 %v176, 5
  %v178 = vand.u32 %v176, 31
  %v179 = vsub.s32 32, %v178
  %v180 = vshrl.u32 683565275, %v179
  %v181 = vshll.u32 683565275, %v178
  %v182 = vshrl.u32 2475754826, %v179
  %v183 = vor.u32 %v181, %v182
  %v184 = vshll.u32 2475754826, %v178
  %v185 = vshrl.u32 2131351028, %v179
  %v186 = vor.u32 %v184, %v185
  %v187 = vshll.u32 2131351028, %v178
  %v188 = vshrl.u32 2102212464, %v179
  %v189 = vor.u32 %v187, %v188
  %v190 = vshll.u32 2102212464, %v178
  %v191 = vshrl.u32 920167782, %v179
  %v192 = vor.u32 %v190, %v191
  %v193 = vshll.u32 920167782, %v178
  %v194 = vshrl.u32 1326507024, %v179
  %v195 = vor.u32 %v193, %v194
  %vm196 = vcmp.lt.s32.totalorder %v177, 1
  %vm197 = vcmp.lt.s32.totalorder %v177, 2
  %vm198 = vcmp.lt.s32.totalorder %v177, 3
  %vm199 = vcmp.lt.s32.totalorder %v177, 4
  %v200 = vsel %vm196, %v180, %v183
  %v201 = vsel %vm199, %v189, 2102212464
  %v202 = vsel %vm198, %v186, %v201
  %v203 = vsel %vm197, %v200, %v202
  %v204 = vsel %vm196, %v183, %v186
  %v205 = vsel %vm199, %v192, 920167782
  %v206 = vsel %vm198, %v189, %v205
  %v207 = vsel %vm197, %v204, %v206
  %v208 = vsel %vm196, %v186, %v189
  %v209 = vsel %vm199, %v195, 1326507024
  %v210 = vsel %vm198, %v192, %v209
  %v211 = vsel %vm197, %v208, %v210
  %v212 = vshll.u32 %v172, 8
  %v213 = vmul.u32.u64.compose %v212, %v211
  %v214 = vextract.low.u32 %v213
  %v215 = vextract.high.u32 %v213
  %v216 = vmul.u32.u64.compose %v212, %v207
  %v217 = vextract.low.u32 %v216
  %v218 = vextract.high.u32 %v216
  %v219 = vmul.u32 %v212, %v203
  %v220 = vadd.s32 %v215, %v217
  %vm221 = vc.u32 %v215, %v217
  %v222 = vadd.s32 %v218, 1
  %v223 = vsel %vm221, %v222, %v218
  %v224 = vadd.s32 %v219, %v223
  %v225 = vadd.s32 %v224, 536870912
  %v226 = vshrl.u32 %v225, 30
  %v227 = vshll.u32 %v226, 30
  %v228 = vsub.s32 %v224, %v227
  %vm229 = vcmp.lt.s32.totalorder %v228, 0
  %v230 = vsub.s32 0, %v228
  %v231 = vsel %vm229, %v230, %v228
  %v232 = vclz %v231
  %v233 = vsub.s32 %v232, 2
  %vm234 = vcmp.gt.s32.totalorder 0, %v233
  %v235 = vsel %vm234, 0, %v233
  %v236 = vsub.s32 32, %v235
  %v237 = vshll.u32 %v228, %v235
  %v238 = vshrl.u32 %v220, %v236
  %v239 = vor.u32 %v237, %v238
  %v240 = vsub.s32 4294967266, %v235
  %v241 = vadd.s32 %v240, 127
  %v242 = vshll.u32 %v241, 23
  %v243 = vor.u32 4788187, %v242
  %v244 = vand.u32 2147483647, %v243
  %v246 = vcvt.s32.f32 %v239
  %v247 = vmul.f32 %v246, %v244
  %v248 = vxor.u32 %v247, 2147483648
  %v249 = vsel %vm166, %v248, %v247
  %v250 = vsub.s32 4, %v226
  %v251 = vsel %vm166, %v250, %v226
  %v252 = vsel %vm165, %v58, %v249
  %v253 = vsel %vm165, 0, %v251
  %v254 = vcosq.f32.pop %v252
  %v255 = vsinq.f32.pop %v252
  %vm256 = vweird.f32 %v58
  %v257 = vadd.s32 %v253, 3
  %v258 = vand.u32 %v257, 3
  %vm259 = vcmp.lt.s32.totalorder %v258, 2
  %vm260 = vcmp.eq.s32.totalorder %v258, 0
  %v261 = vxor.u32 %v255, 2147483648
  %v262 = vsel %vm260, %v254, %v261
  %vm263 = vcmp.eq.s32.totalorder %v258, 2
  %v264 = vxor.u32 %v254, 2147483648
  %v265 = vsel %vm263, %v264, %v255
  %v266 = vsel %vm259, %v262, %v265
  %v267 = vsel %vm256, nan, %v266
  %v268 = vsel %vm60, 1, 0
  %v269 = vlaneseq
  %v270 = vshrl.u32 %v269, 7
  %v271 = vsub.s32 0, %v270
  %v272 = vrot.slane %v268, %v271
  %vm273 = vcmp.eq.s32.totalorder %v272, 1
  %v274 = vsel %vm273, %v163, %v267
  %275 = vst [vmem:[%s3] sm:$0x3] %v274
  // Predicated region
  $region14: #{sinusoidal_position_embedding.1} parent=0 // pred_check
    _
  $region15: #{sinusoidal_position_embedding.1} parent=0 // pred_check_branch
    %277 = sbr.rel (0) target = $region17
  $region16: #{sinusoidal_position_embedding.1} parent=0 // pred_region
    _
  $region17: #{sinusoidal_position_embedding.1} parent=0 // pred_fallthru
    _
  // Predicated region
  $region18: #{sinusoidal_position_embedding.1} parent=0 // pred_check
    _
  $region19: #{sinusoidal_position_embedding.1} parent=0 // pred_check_branch
    %279 = sbr.rel (0) target = $region21
  $region20: #{sinusoidal_position_embedding.1} parent=0 // pred_region
    _
  $region21: #{sinusoidal_position_embedding.1} parent=0 // pred_fallthru
    _

</llo_original>
